<compile_context>
chip_gen: v7x
topology: tpu7x:2x2x1
jax: 0.10.0
libtpu: 0.0.40
codegen_flags: <defaults>
</compile_context>

<pallas_src>
import functools

import jax
import jax.numpy as jnp
import numpy as np
from jax import lax
from jax.experimental import pallas as pl

_LANE = 128     # pad feature / vocab / hidden / score dims to lane width
_SUBLANE = 8    # pad row (batch) dims to the sublane count


def _round_up(x, m):
    return ((x + m - 1) // m) * m


def _full_spec(shape):
    # Whole-array block (grid of size 1): block_shape == array shape, so the
    # (8,128) divisibility rule does not apply.
    return pl.BlockSpec(shape, lambda *_: (0,) * len(shape))


def _pad_rows(x, rows, dtype):
    return jnp.pad(x.astype(dtype), ((0, rows - x.shape[0]), (0, 0)))


# ----------------------------------------------------------------------------
# In-kernel building block: embedding gather + masked mean pool + proj + tanh
#   ids:(N,L) i32, am:(N,L) f32, tw:(Vp,Hp) = table @ w (pre-folded), b:(1,Hp)
#   -> (N, Hp) f32
# ----------------------------------------------------------------------------
def _encode_block(ids_ref, am_ref, tw_ref, b_ref):
    ids = ids_ref[...]
    am = am_ref[...]
    n, l = ids.shape
    vp = tw_ref.shape[0]

    # Exact masked-mean normalisation folded into the token weights.
    denom = jnp.maximum(jnp.sum(am, axis=1, keepdims=True), 1.0)     # (N,1)
    am_n = am / denom                                                # (N,L)

    # Weighted bag-of-tokens accumulated over L on (N, Vp) vregs:
    #   bag[n, v] = sum_l am_n[n, l] * [ids[n, l] == v]
    lane_iota = lax.broadcasted_iota(jnp.int32, (n, vp), 1)
    bag = jnp.zeros((n, vp), jnp.float32)
    # TODO(synk): at production L (512) switch to lax.fori_loop(..., unroll=True);
    # at production vocab (~30k) replace the bag with a scalar-prefetch /
    # manual-DMA row gather from an HBM-resident table (pl.ANY) instead.
    for li in range(l):
        tok = ids[:, li:li + 1]                                      # (N,1)
        wgt = am_n[:, li:li + 1]                                     # (N,1)
        bag = bag + jnp.where(tok == lane_iota, wgt, 0.0)

    # Pool + projection in one MXU matmul (projection folded into tw).
    h = jnp.dot(bag, tw_ref[...], preferred_element_type=jnp.float32)
    h = h + b_ref[...]
    return jnp.tanh(h)


# ----------------------------------------------------------------------------
# Fused retriever kernel: question encode + passage encode (+ scores)
# ----------------------------------------------------------------------------
def _make_retriever_kernel(with_scores):
    def kernel(q_ids_ref, q_am_ref, p_ids_ref, p_am_ref,
               q_tw_ref, q_b_ref, p_tw_ref, p_b_ref, *out_refs):
        hq = _encode_block(q_ids_ref, q_am_ref, q_tw_ref, q_b_ref)
        hp = _encode_block(p_ids_ref, p_am_ref, p_tw_ref, p_b_ref)
        if with_scores:
            # One full cross matmul (contract last dims, no transpose) into a
            # lane-dense (Np padded to 128) block; valid entries are extracted
            # in the wrapper, so padded-row garbage (tanh(b)) is never read.
            out_refs[0][...] = lax.dot_general(
                hq, hp, (((1,), (1,)), ((), ())),
                preferred_element_type=jnp.float32)
        else:
            out_refs[0][...] = hq           # (Nq_pad, Hp) lane-dense
            out_refs[1][...] = hp           # (Np_pad, Hp) lane-dense
    return kernel


@functools.partial(jax.jit,
                   static_argnames=("n_cands", "with_scores",
                                    "hq_true", "hp_true"))
def _retriever_call(q_ids, q_am, p_ids, p_am, q_tw, q_b, p_tw, p_b, *,
                    n_cands, with_scores, hq_true, hp_true):
    """Single pallas_call: encode question + flattened passages, opt. scores."""
    nq = q_ids.shape[0]
    np_flat = p_ids.shape[0]
    hq_pad = q_tw.shape[1]
    hp_pad = p_tw.shape[1]

    nq_pad = _round_up(nq, _SUBLANE)
    # For the score path the passage-row count becomes the score lane dim, so
    # pad it to 128 for unmasked full-block stores (lane-dense output).
    np_pad = _round_up(np_flat, _LANE if with_scores else _SUBLANE)

    inputs = (
        _pad_rows(q_ids, nq_pad, jnp.int32),
        _pad_rows(q_am, nq_pad, jnp.float32),
        _pad_rows(p_ids, np_pad, jnp.int32),
        _pad_rows(p_am, np_pad, jnp.float32),
        q_tw, q_b, p_tw, p_b,
    )

    if with_scores:
        # compute_score discards the embeddings -> do not write them at all.
        out_shapes = (jax.ShapeDtypeStruct((nq_pad, np_pad), jnp.float32),)
    else:
        out_shapes = (jax.ShapeDtypeStruct((nq_pad, hq_pad), jnp.float32),
                      jax.ShapeDtypeStruct((np_pad, hp_pad), jnp.float32))

    # TODO(synk): at production sizes add a grid over the flattened passage
    # rows with (tile_n, L)/(tile_n, Hp) BlockSpecs and
    # dimension_semantics=("parallel",) (megacore on v7x, pipelined DMA
    # everywhere); keep the 30k-vocab tables HBM-resident (pl.ANY) + DMA row
    # gather on v7x (64 MiB VMEM), or bf16-resident with a raised
    # vmem_limit_bytes on v6e/v5e.
    outs = pl.pallas_call(
        _make_retriever_kernel(with_scores),
        out_shape=out_shapes,
        in_specs=[_full_spec(x.shape) for x in inputs],
        out_specs=tuple(_full_spec(s.shape) for s in out_shapes),
    )(*inputs)

    if with_scores:
        s_full = outs[0]
        if n_cands is None:
            return s_full[:nq, :np_flat]
        # Block-diagonal extraction (wrapper-side layout plumbing).
        idx = (jnp.arange(nq)[:, None] * n_cands
               + jnp.arange(n_cands)[None, :])
        return jnp.take_along_axis(s_full[:nq], idx, axis=1)
    return outs[0][:nq, :hq_true], outs[1][:np_flat, :hp_true]


# ----------------------------------------------------------------------------
# Standalone embs_dot_product (module-level API), transpose-free on the MXU
# ----------------------------------------------------------------------------
def _score_2d_kernel(q_ref, p_ref, o_ref):
    o_ref[...] = lax.dot_general(q_ref[...], p_ref[...],
                                 (((1,), (1,)), ((), ())),
                                 preferred_element_type=jnp.float32)


def _score_3d_kernel(q_ref, p_ref, o_ref):
    # q:(Bp,1,Hp)  p:(Bp,Cp,Hp)  ->  o:(Bp,1,Cp): one batched dot_general.
    o_ref[...] = lax.dot_general(q_ref[...], p_ref[...],
                                 (((2,), (2,)), ((0,), (0,))),
                                 preferred_element_type=jnp.float32)


@jax.jit
def embs_dot_product(p_embs, q_emb):
    """Pallas port of the reference embs_dot_product (lane-dense outputs)."""
    q_emb = q_emb.astype(jnp.float32)
    p_embs = p_embs.astype(jnp.float32)
    b, h = q_emb.shape
    bp = _round_up(b, _SUBLANE)
    hp = _round_up(h, _LANE)

    if p_embs.ndim == 2:
        c = p_embs.shape[0]
        cp = _round_up(c, _LANE)
        q_p = jnp.pad(q_emb, ((0, bp - b), (0, hp - h)))
        p_p = jnp.pad(p_embs, ((0, cp - c), (0, hp - h)))
        out = pl.pallas_call(
            _score_2d_kernel,
            out_shape=jax.ShapeDtypeStruct((bp, cp), jnp.float32),
            in_specs=[_full_spec(q_p.shape), _full_spec(p_p.shape)],
            out_specs=_full_spec((bp, cp)),
        )(q_p, p_p)
        return out[:b, :c]

    if p_embs.ndim == 3:
        c = p_embs.shape[1]
        cp = _round_up(c, _LANE)
        q_p = jnp.pad(q_emb, ((0, bp - b), (0, hp - h)))[:, None, :]
        p_p = jnp.pad(p_embs, ((0, bp - b), (0, cp - c), (0, hp - h)))
        out = pl.pallas_call(
            _score_3d_kernel,
            out_shape=jax.ShapeDtypeStruct((bp, 1, cp), jnp.float32),
            in_specs=[_full_spec(q_p.shape), _full_spec(p_p.shape)],
            out_specs=_full_spec((bp, 1, cp)),
        )(q_p, p_p)
        return out[:b, 0, :c]

    raise ValueError("Invalid dimensions of passage embeddings")


# ----------------------------------------------------------------------------
# EmbeddingRetriever (JAX/Pallas)
# ----------------------------------------------------------------------------
def _prepare_encoder(table, w, b):
    """Fold projection into the table, pad to lane multiples, cast — ONCE."""
    v, d = table.shape
    h = w.shape[1]
    vp = _round_up(v, _LANE)
    hp = _round_up(h, _LANE)
    tw = jnp.dot(table.astype(jnp.float32), w.astype(jnp.float32),
                 precision=lax.Precision.HIGHEST)                    # (V, H)
    tw_p = jnp.pad(tw, ((0, vp - v), (0, hp - h)))
    b_p = jnp.pad(b.astype(jnp.float32).reshape(1, -1), ((0, 0), (0, hp - h)))
    return tw_p, b_p, h


class EmbeddingRetriever:
    """JAX/Pallas port of EmbeddingRetriever.forward / compute_score.

    The two BERT encoders are synthetic (embedding lookup + masked mean pool +
    dense + tanh). Question encode, passage encode and (for compute_score) the
    dot-product scoring all run in one fused Pallas kernel launch.
    """
    # TODO(synk): tokenizer-based paths (embed_question / embed_paragraph via
    # encode_plus) and predict()'s softmax/top-k are not reproduced here.

    def __init__(self, q_params, p_params):
        # Pad / cast / fold once at construction (not per call).
        self.q_tw, self.q_b, self.q_hidden = _prepare_encoder(*q_params)
        self.p_tw, self.p_b, self.p_hidden = _prepare_encoder(*p_params)
        self.returns_embeddings = True

    @staticmethod
    def _flatten_passages(passages):
        p_ids, p_am = passages["ids"], passages["am"]
        if p_ids.ndim == 2:
            return p_ids, p_am, None
        if p_ids.ndim == 3:
            b, c, l = p_ids.shape
            return p_ids.reshape(b * c, l), p_am.reshape(b * c, l), c
        raise ValueError("Invalid dimensions of passage ids")

    def compute_embeddings(self, question, passages):
        p_ids, p_am, n_cands = self._flatten_passages(passages)
        h_q, h_p = _retriever_call(
            question["ids"], question["am"], p_ids, p_am,
            self.q_tw, self.q_b, self.p_tw, self.p_b,
            n_cands=n_cands, with_scores=False,
            hq_true=self.q_hidden, hp_true=self.p_hidden)
        if n_cands is not None:
            b = passages["ids"].shape[0]
            h_p = h_p.reshape(b, n_cands, -1)
        return h_q, h_p

    def forward(self, question, passages):
        return self.compute_embeddings(question, passages)

    def compute_score(self, question, passages):
        # Fully fused: encode question + passages + embs_dot_product in one
        # pallas_call; intermediate embeddings never hit HBM.
        p_ids, p_am, n_cands = self._flatten_passages(passages)
        return _retriever_call(
            question["ids"], question["am"], p_ids, p_am,
            self.q_tw, self.q_b, self.p_tw, self.p_b,
            n_cands=n_cands, with_scores=True,
            hq_true=self.q_hidden, hp_true=self.p_hidden)


# ----------------------------------------------------------------------------
# Pure-JAX reference (correctness check)
# ----------------------------------------------------------------------------
def _encoder_ref(ids, am, emb_table, w, b):
    x = jnp.take(emb_table, ids, axis=0).astype(jnp.float32)
    am_f = am.astype(jnp.float32)
    pooled = jnp.sum(x * am_f[:, :, None], axis=1) / jnp.maximum(
        jnp.sum(am_f, axis=1, keepdims=True), 1.0)
    return jnp.tanh(pooled @ w + b)


if __name__ == "__main__":
    # Small, module-consistent shapes.
    B, C = 2, 3           # batch, candidate passages per question
    LQ, LP = 8, 16        # max_question_len, max_paragraph_len
    V, D, H = 64, 32, 32  # vocab, embedding dim, hidden dim

    key = jax.random.PRNGKey(0)
    k_qt, k_qw, k_qb, k_pt, k_pw, k_pb, k_qi, k_pi = jax.random.split(key, 8)

    q_params = (
        jax.random.normal(k_qt, (V, D), jnp.float32) * 0.1,
        jax.random.normal(k_qw, (D, H), jnp.float32) * 0.1,
        jax.random.normal(k_qb, (1, H), jnp.float32) * 0.01,
    )
    p_params = (
        jax.random.normal(k_pt, (V, D), jnp.float32) * 0.1,
        jax.random.normal(k_pw, (D, H), jnp.float32) * 0.1,
        jax.random.normal(k_pb, (1, H), jnp.float32) * 0.01,
    )

    q_ids = jax.random.randint(k_qi, (B, LQ), 0, V, dtype=jnp.int32)
    p_ids = jax.random.randint(k_pi, (B, C, LP), 0, V, dtype=jnp.int32)
    q_am = (jnp.arange(LQ)[None, :] < jnp.array([[6], [8]])).astype(jnp.float32)
    p_am = (jnp.arange(LP)[None, None, :]
            < jnp.full((B, C, 1), 12)).astype(jnp.float32)

    question = {"ids": q_ids, "am": q_am}
    passages = {"ids": p_ids, "am": p_am}

    retriever = EmbeddingRetriever(q_params, p_params)

    # forward == compute_embeddings (one fused pallas_call, no scores)
    h_q, h_p = retriever.forward(question, passages)
    h_q = jax.block_until_ready(h_q)
    h_p = jax.block_until_ready(h_p)

    # compute_score (one fused pallas_call: encode + encode + full matmul)
    scores = jax.block_until_ready(retriever.compute_score(question, passages))

    # Standalone embs_dot_product on the returned embeddings (3-D and 2-D).
    scores_3d = jax.block_until_ready(embs_dot_product(h_p, h_q))
    h_p_flat = h_p.reshape(B * C, H)
    scores_2d = jax.block_until_ready(embs_dot_product(h_p_flat, h_q))

    # Pure-JAX reference. Residual tolerance covers MXU default-precision f32
    # matmuls only (the mean-pool normalisation is exact in this revision).
    h_q_ref = _encoder_ref(q_ids, q_am, *q_params)
    h_p_ref = _encoder_ref(
        p_ids.reshape(B * C, LP), p_am.reshape(B * C, LP), *p_params
    ).reshape(B, C, H)
    scores_ref = jnp.einsum("bh,bch->bc", h_q_ref, h_p_ref)
    scores_3d_ref = jnp.einsum("bh,bch->bc", h_q, h_p)
    scores_2d_ref = h_q @ h_p_flat.T

    np.testing.assert_allclose(np.asarray(h_q), np.asarray(h_q_ref),
                               rtol=2e-3, atol=2e-4)
    np.testing.assert_allclose(np.asarray(h_p), np.asarray(h_p_ref),
                               rtol=2e-3, atol=2e-4)
    np.testing.assert_allclose(np.asarray(scores), np.asarray(scores_ref),
                               rtol=2e-3, atol=2e-4)
    np.testing.assert_allclose(np.asarray(scores_3d), np.asarray(scores_3d_ref),
                               rtol=2e-3, atol=2e-4)
    np.testing.assert_allclose(np.asarray(scores_2d), np.asarray(scores_2d_ref),
                               rtol=2e-3, atol=2e-4)

    assert h_q.shape == (B, H) and h_p.shape == (B, C, H)
    assert scores.shape == (B, C) and scores_3d.shape == (B, C)
    assert scores_2d.shape == (B, B * C)
    print("KERNEL_OK")
</pallas_src>

<mosaic_0001>
module attributes {stable_mosaic.version = 11 : i64} {
  func.func @kernel(%arg0: memref<8x8xi32, #tpu.memory_space<vmem>>, %arg1: memref<8x8xf32, #tpu.memory_space<vmem>>, %arg2: memref<8x16xi32, #tpu.memory_space<vmem>>, %arg3: memref<8x16xf32, #tpu.memory_space<vmem>>, %arg4: memref<128x128xf32, #tpu.memory_space<vmem>>, %arg5: memref<1x128xf32, #tpu.memory_space<vmem>>, %arg6: memref<128x128xf32, #tpu.memory_space<vmem>>, %arg7: memref<1x128xf32, #tpu.memory_space<vmem>>, %arg8: memref<8x128xf32, #tpu.memory_space<vmem>>, %arg9: memref<8x128xf32, #tpu.memory_space<vmem>>) attributes {dimension_semantics = [], scalar_prefetch = 0 : i64, scratch_operands = 0 : i64, tpu.core_type = #tpu.core_type<tc>} {
    %c0 = arith.constant 0 : index
    %c0_0 = arith.constant 0 : index
    %0 = vector.load %arg0[%c0, %c0_0] : memref<8x8xi32, #tpu.memory_space<vmem>>, vector<8x8xi32>
    %c0_1 = arith.constant 0 : index
    %c0_2 = arith.constant 0 : index
    %1 = vector.load %arg1[%c0_1, %c0_2] : memref<8x8xf32, #tpu.memory_space<vmem>>, vector<8x8xf32>
    %cst = arith.constant dense<0.000000e+00> : vector<8xf32>
    %2 = vector.multi_reduction <add>, %1, %cst [1] : vector<8x8xf32> to vector<8xf32>
    %3 = vector.shape_cast %2 : vector<8xf32> to vector<8x1xf32>
    %cst_3 = arith.constant 1.000000e+00 : f32
    %4 = vector.broadcast %cst_3 : f32 to vector<8x1xf32>
    %5 = arith.maximumf %3, %4 : vector<8x1xf32>
    %6 = vector.broadcast %5 : vector<8x1xf32> to vector<8x8xf32>
    %7 = arith.divf %1, %6 : vector<8x8xf32>
    %8 = tpu.iota {dimensions = array<i32: 1>} : vector<8x128xi32>
    %cst_4 = arith.constant 0.000000e+00 : f32
    %9 = vector.broadcast %cst_4 : f32 to vector<8x128xf32>
    %10 = vector.extract_strided_slice %0 {offsets = [0, 0], sizes = [8, 1], strides = [1, 1]} : vector<8x8xi32> to vector<8x1xi32>
    %11 = vector.extract_strided_slice %7 {offsets = [0, 0], sizes = [8, 1], strides = [1, 1]} : vector<8x8xf32> to vector<8x1xf32>
    %12 = vector.broadcast %10 : vector<8x1xi32> to vector<8x128xi32>
    %13 = arith.cmpi eq, %12, %8 : vector<8x128xi32>
    %cst_5 = arith.constant 0.000000e+00 : f32
    %14 = vector.shape_cast %11 : vector<8x1xf32> to vector<8x1xf32>
    %15 = vector.broadcast %14 : vector<8x1xf32> to vector<8x128xf32>
    %16 = vector.broadcast %cst_5 : f32 to vector<8x128xf32>
    %17 = arith.select %13, %15, %16 : vector<8x128xi1>, vector<8x128xf32>
    %18 = arith.addf %9, %17 : vector<8x128xf32>
    %19 = vector.extract_strided_slice %0 {offsets = [0, 1], sizes = [8, 1], strides = [1, 1]} : vector<8x8xi32> to vector<8x1xi32>
    %20 = vector.extract_strided_slice %7 {offsets = [0, 1], sizes = [8, 1], strides = [1, 1]} : vector<8x8xf32> to vector<8x1xf32>
    %21 = vector.broadcast %19 : vector<8x1xi32> to vector<8x128xi32>
    %22 = arith.cmpi eq, %21, %8 : vector<8x128xi32>
    %cst_6 = arith.constant 0.000000e+00 : f32
    %23 = vector.shape_cast %20 : vector<8x1xf32> to vector<8x1xf32>
    %24 = vector.broadcast %23 : vector<8x1xf32> to vector<8x128xf32>
    %25 = vector.broadcast %cst_6 : f32 to vector<8x128xf32>
    %26 = arith.select %22, %24, %25 : vector<8x128xi1>, vector<8x128xf32>
    %27 = arith.addf %18, %26 : vector<8x128xf32>
    %28 = vector.extract_strided_slice %0 {offsets = [0, 2], sizes = [8, 1], strides = [1, 1]} : vector<8x8xi32> to vector<8x1xi32>
    %29 = vector.extract_strided_slice %7 {offsets = [0, 2], sizes = [8, 1], strides = [1, 1]} : vector<8x8xf32> to vector<8x1xf32>
    %30 = vector.broadcast %28 : vector<8x1xi32> to vector<8x128xi32>
    %31 = arith.cmpi eq, %30, %8 : vector<8x128xi32>
    %cst_7 = arith.constant 0.000000e+00 : f32
    %32 = vector.shape_cast %29 : vector<8x1xf32> to vector<8x1xf32>
    %33 = vector.broadcast %32 : vector<8x1xf32> to vector<8x128xf32>
    %34 = vector.broadcast %cst_7 : f32 to vector<8x128xf32>
    %35 = arith.select %31, %33, %34 : vector<8x128xi1>, vector<8x128xf32>
    %36 = arith.addf %27, %35 : vector<8x128xf32>
    %37 = vector.extract_strided_slice %0 {offsets = [0, 3], sizes = [8, 1], strides = [1, 1]} : vector<8x8xi32> to vector<8x1xi32>
    %38 = vector.extract_strided_slice %7 {offsets = [0, 3], sizes = [8, 1], strides = [1, 1]} : vector<8x8xf32> to vector<8x1xf32>
    %39 = vector.broadcast %37 : vector<8x1xi32> to vector<8x128xi32>
    %40 = arith.cmpi eq, %39, %8 : vector<8x128xi32>
    %cst_8 = arith.constant 0.000000e+00 : f32
    %41 = vector.shape_cast %38 : vector<8x1xf32> to vector<8x1xf32>
    %42 = vector.broadcast %41 : vector<8x1xf32> to vector<8x128xf32>
    %43 = vector.broadcast %cst_8 : f32 to vector<8x128xf32>
    %44 = arith.select %40, %42, %43 : vector<8x128xi1>, vector<8x128xf32>
    %45 = arith.addf %36, %44 : vector<8x128xf32>
    %46 = vector.extract_strided_slice %0 {offsets = [0, 4], sizes = [8, 1], strides = [1, 1]} : vector<8x8xi32> to vector<8x1xi32>
    %47 = vector.extract_strided_slice %7 {offsets = [0, 4], sizes = [8, 1], strides = [1, 1]} : vector<8x8xf32> to vector<8x1xf32>
    %48 = vector.broadcast %46 : vector<8x1xi32> to vector<8x128xi32>
    %49 = arith.cmpi eq, %48, %8 : vector<8x128xi32>
    %cst_9 = arith.constant 0.000000e+00 : f32
    %50 = vector.shape_cast %47 : vector<8x1xf32> to vector<8x1xf32>
    %51 = vector.broadcast %50 : vector<8x1xf32> to vector<8x128xf32>
    %52 = vector.broadcast %cst_9 : f32 to vector<8x128xf32>
    %53 = arith.select %49, %51, %52 : vector<8x128xi1>, vector<8x128xf32>
    %54 = arith.addf %45, %53 : vector<8x128xf32>
    %55 = vector.extract_strided_slice %0 {offsets = [0, 5], sizes = [8, 1], strides = [1, 1]} : vector<8x8xi32> to vector<8x1xi32>
    %56 = vector.extract_strided_slice %7 {offsets = [0, 5], sizes = [8, 1], strides = [1, 1]} : vector<8x8xf32> to vector<8x1xf32>
    %57 = vector.broadcast %55 : vector<8x1xi32> to vector<8x128xi32>
    %58 = arith.cmpi eq, %57, %8 : vector<8x128xi32>
    %cst_10 = arith.constant 0.000000e+00 : f32
    %59 = vector.shape_cast %56 : vector<8x1xf32> to vector<8x1xf32>
    %60 = vector.broadcast %59 : vector<8x1xf32> to vector<8x128xf32>
    %61 = vector.broadcast %cst_10 : f32 to vector<8x128xf32>
    %62 = arith.select %58, %60, %61 : vector<8x128xi1>, vector<8x128xf32>
    %63 = arith.addf %54, %62 : vector<8x128xf32>
    %64 = vector.extract_strided_slice %0 {offsets = [0, 6], sizes = [8, 1], strides = [1, 1]} : vector<8x8xi32> to vector<8x1xi32>
    %65 = vector.extract_strided_slice %7 {offsets = [0, 6], sizes = [8, 1], strides = [1, 1]} : vector<8x8xf32> to vector<8x1xf32>
    %66 = vector.broadcast %64 : vector<8x1xi32> to vector<8x128xi32>
    %67 = arith.cmpi eq, %66, %8 : vector<8x128xi32>
    %cst_11 = arith.constant 0.000000e+00 : f32
    %68 = vector.shape_cast %65 : vector<8x1xf32> to vector<8x1xf32>
    %69 = vector.broadcast %68 : vector<8x1xf32> to vector<8x128xf32>
    %70 = vector.broadcast %cst_11 : f32 to vector<8x128xf32>
    %71 = arith.select %67, %69, %70 : vector<8x128xi1>, vector<8x128xf32>
    %72 = arith.addf %63, %71 : vector<8x128xf32>
    %73 = vector.extract_strided_slice %0 {offsets = [0, 7], sizes = [8, 1], strides = [1, 1]} : vector<8x8xi32> to vector<8x1xi32>
    %74 = vector.extract_strided_slice %7 {offsets = [0, 7], sizes = [8, 1], strides = [1, 1]} : vector<8x8xf32> to vector<8x1xf32>
    %75 = vector.broadcast %73 : vector<8x1xi32> to vector<8x128xi32>
    %76 = arith.cmpi eq, %75, %8 : vector<8x128xi32>
    %cst_12 = arith.constant 0.000000e+00 : f32
    %77 = vector.shape_cast %74 : vector<8x1xf32> to vector<8x1xf32>
    %78 = vector.broadcast %77 : vector<8x1xf32> to vector<8x128xf32>
    %79 = vector.broadcast %cst_12 : f32 to vector<8x128xf32>
    %80 = arith.select %76, %78, %79 : vector<8x128xi1>, vector<8x128xf32>
    %81 = arith.addf %72, %80 : vector<8x128xf32>
    %c0_13 = arith.constant 0 : index
    %c0_14 = arith.constant 0 : index
    %82 = vector.load %arg4[%c0_13, %c0_14] : memref<128x128xf32, #tpu.memory_space<vmem>>, vector<128x128xf32>
    %cst_15 = arith.constant dense<0.000000e+00> : vector<8x128xf32>
    %83 = tpu.matmul %81, %82, %cst_15 {dimension_numbers = #tpu.dot_dimension_numbers<[1], [0], [0], [1], [0, 0, 1, 1], [], []>} : vector<8x128xf32>, vector<128x128xf32>, vector<8x128xf32> -> vector<8x128xf32>
    %c0_16 = arith.constant 0 : index
    %c0_17 = arith.constant 0 : index
    %84 = vector.load %arg5[%c0_16, %c0_17] : memref<1x128xf32, #tpu.memory_space<vmem>>, vector<1x128xf32>
    %85 = vector.broadcast %84 : vector<1x128xf32> to vector<8x128xf32>
    %86 = arith.addf %83, %85 : vector<8x128xf32>
    %87 = math.tanh %86 : vector<8x128xf32>
    %c0_18 = arith.constant 0 : index
    %c0_19 = arith.constant 0 : index
    %88 = vector.load %arg2[%c0_18, %c0_19] : memref<8x16xi32, #tpu.memory_space<vmem>>, vector<8x16xi32>
    %c0_20 = arith.constant 0 : index
    %c0_21 = arith.constant 0 : index
    %89 = vector.load %arg3[%c0_20, %c0_21] : memref<8x16xf32, #tpu.memory_space<vmem>>, vector<8x16xf32>
    %cst_22 = arith.constant dense<0.000000e+00> : vector<8xf32>
    %90 = vector.multi_reduction <add>, %89, %cst_22 [1] : vector<8x16xf32> to vector<8xf32>
    %91 = vector.shape_cast %90 : vector<8xf32> to vector<8x1xf32>
    %cst_23 = arith.constant 1.000000e+00 : f32
    %92 = vector.broadcast %cst_23 : f32 to vector<8x1xf32>
    %93 = arith.maximumf %91, %92 : vector<8x1xf32>
    %94 = vector.broadcast %93 : vector<8x1xf32> to vector<8x16xf32>
    %95 = arith.divf %89, %94 : vector<8x16xf32>
    %96 = tpu.iota {dimensions = array<i32: 1>} : vector<8x128xi32>
    %cst_24 = arith.constant 0.000000e+00 : f32
    %97 = vector.broadcast %cst_24 : f32 to vector<8x128xf32>
    %98 = vector.extract_strided_slice %88 {offsets = [0, 0], sizes = [8, 1], strides = [1, 1]} : vector<8x16xi32> to vector<8x1xi32>
    %99 = vector.extract_strided_slice %95 {offsets = [0, 0], sizes = [8, 1], strides = [1, 1]} : vector<8x16xf32> to vector<8x1xf32>
    %100 = vector.broadcast %98 : vector<8x1xi32> to vector<8x128xi32>
    %101 = arith.cmpi eq, %100, %96 : vector<8x128xi32>
    %cst_25 = arith.constant 0.000000e+00 : f32
    %102 = vector.shape_cast %99 : vector<8x1xf32> to vector<8x1xf32>
    %103 = vector.broadcast %102 : vector<8x1xf32> to vector<8x128xf32>
    %104 = vector.broadcast %cst_25 : f32 to vector<8x128xf32>
    %105 = arith.select %101, %103, %104 : vector<8x128xi1>, vector<8x128xf32>
    %106 = arith.addf %97, %105 : vector<8x128xf32>
    %107 = vector.extract_strided_slice %88 {offsets = [0, 1], sizes = [8, 1], strides = [1, 1]} : vector<8x16xi32> to vector<8x1xi32>
    %108 = vector.extract_strided_slice %95 {offsets = [0, 1], sizes = [8, 1], strides = [1, 1]} : vector<8x16xf32> to vector<8x1xf32>
    %109 = vector.broadcast %107 : vector<8x1xi32> to vector<8x128xi32>
    %110 = arith.cmpi eq, %109, %96 : vector<8x128xi32>
    %cst_26 = arith.constant 0.000000e+00 : f32
    %111 = vector.shape_cast %108 : vector<8x1xf32> to vector<8x1xf32>
    %112 = vector.broadcast %111 : vector<8x1xf32> to vector<8x128xf32>
    %113 = vector.broadcast %cst_26 : f32 to vector<8x128xf32>
    %114 = arith.select %110, %112, %113 : vector<8x128xi1>, vector<8x128xf32>
    %115 = arith.addf %106, %114 : vector<8x128xf32>
    %116 = vector.extract_strided_slice %88 {offsets = [0, 2], sizes = [8, 1], strides = [1, 1]} : vector<8x16xi32> to vector<8x1xi32>
    %117 = vector.extract_strided_slice %95 {offsets = [0, 2], sizes = [8, 1], strides = [1, 1]} : vector<8x16xf32> to vector<8x1xf32>
    %118 = vector.broadcast %116 : vector<8x1xi32> to vector<8x128xi32>
    %119 = arith.cmpi eq, %118, %96 : vector<8x128xi32>
    %cst_27 = arith.constant 0.000000e+00 : f32
    %120 = vector.shape_cast %117 : vector<8x1xf32> to vector<8x1xf32>
    %121 = vector.broadcast %120 : vector<8x1xf32> to vector<8x128xf32>
    %122 = vector.broadcast %cst_27 : f32 to vector<8x128xf32>
    %123 = arith.select %119, %121, %122 : vector<8x128xi1>, vector<8x128xf32>
    %124 = arith.addf %115, %123 : vector<8x128xf32>
    %125 = vector.extract_strided_slice %88 {offsets = [0, 3], sizes = [8, 1], strides = [1, 1]} : vector<8x16xi32> to vector<8x1xi32>
    %126 = vector.extract_strided_slice %95 {offsets = [0, 3], sizes = [8, 1], strides = [1, 1]} : vector<8x16xf32> to vector<8x1xf32>
    %127 = vector.broadcast %125 : vector<8x1xi32> to vector<8x128xi32>
    %128 = arith.cmpi eq, %127, %96 : vector<8x128xi32>
    %cst_28 = arith.constant 0.000000e+00 : f32
    %129 = vector.shape_cast %126 : vector<8x1xf32> to vector<8x1xf32>
    %130 = vector.broadcast %129 : vector<8x1xf32> to vector<8x128xf32>
    %131 = vector.broadcast %cst_28 : f32 to vector<8x128xf32>
    %132 = arith.select %128, %130, %131 : vector<8x128xi1>, vector<8x128xf32>
    %133 = arith.addf %124, %132 : vector<8x128xf32>
    %134 = vector.extract_strided_slice %88 {offsets = [0, 4], sizes = [8, 1], strides = [1, 1]} : vector<8x16xi32> to vector<8x1xi32>
    %135 = vector.extract_strided_slice %95 {offsets = [0, 4], sizes = [8, 1], strides = [1, 1]} : vector<8x16xf32> to vector<8x1xf32>
    %136 = vector.broadcast %134 : vector<8x1xi32> to vector<8x128xi32>
    %137 = arith.cmpi eq, %136, %96 : vector<8x128xi32>
    %cst_29 = arith.constant 0.000000e+00 : f32
    %138 = vector.shape_cast %135 : vector<8x1xf32> to vector<8x1xf32>
    %139 = vector.broadcast %138 : vector<8x1xf32> to vector<8x128xf32>
    %140 = vector.broadcast %cst_29 : f32 to vector<8x128xf32>
    %141 = arith.select %137, %139, %140 : vector<8x128xi1>, vector<8x128xf32>
    %142 = arith.addf %133, %141 : vector<8x128xf32>
    %143 = vector.extract_strided_slice %88 {offsets = [0, 5], sizes = [8, 1], strides = [1, 1]} : vector<8x16xi32> to vector<8x1xi32>
    %144 = vector.extract_strided_slice %95 {offsets = [0, 5], sizes = [8, 1], strides = [1, 1]} : vector<8x16xf32> to vector<8x1xf32>
    %145 = vector.broadcast %143 : vector<8x1xi32> to vector<8x128xi32>
    %146 = arith.cmpi eq, %145, %96 : vector<8x128xi32>
    %cst_30 = arith.constant 0.000000e+00 : f32
    %147 = vector.shape_cast %144 : vector<8x1xf32> to vector<8x1xf32>
    %148 = vector.broadcast %147 : vector<8x1xf32> to vector<8x128xf32>
    %149 = vector.broadcast %cst_30 : f32 to vector<8x128xf32>
    %150 = arith.select %146, %148, %149 : vector<8x128xi1>, vector<8x128xf32>
    %151 = arith.addf %142, %150 : vector<8x128xf32>
    %152 = vector.extract_strided_slice %88 {offsets = [0, 6], sizes = [8, 1], strides = [1, 1]} : vector<8x16xi32> to vector<8x1xi32>
    %153 = vector.extract_strided_slice %95 {offsets = [0, 6], sizes = [8, 1], strides = [1, 1]} : vector<8x16xf32> to vector<8x1xf32>
    %154 = vector.broadcast %152 : vector<8x1xi32> to vector<8x128xi32>
    %155 = arith.cmpi eq, %154, %96 : vector<8x128xi32>
    %cst_31 = arith.constant 0.000000e+00 : f32
    %156 = vector.shape_cast %153 : vector<8x1xf32> to vector<8x1xf32>
    %157 = vector.broadcast %156 : vector<8x1xf32> to vector<8x128xf32>
    %158 = vector.broadcast %cst_31 : f32 to vector<8x128xf32>
    %159 = arith.select %155, %157, %158 : vector<8x128xi1>, vector<8x128xf32>
    %160 = arith.addf %151, %159 : vector<8x128xf32>
    %161 = vector.extract_strided_slice %88 {offsets = [0, 7], sizes = [8, 1], strides = [1, 1]} : vector<8x16xi32> to vector<8x1xi32>
    %162 = vector.extract_strided_slice %95 {offsets = [0, 7], sizes = [8, 1], strides = [1, 1]} : vector<8x16xf32> to vector<8x1xf32>
    %163 = vector.broadcast %161 : vector<8x1xi32> to vector<8x128xi32>
    %164 = arith.cmpi eq, %163, %96 : vector<8x128xi32>
    %cst_32 = arith.constant 0.000000e+00 : f32
    %165 = vector.shape_cast %162 : vector<8x1xf32> to vector<8x1xf32>
    %166 = vector.broadcast %165 : vector<8x1xf32> to vector<8x128xf32>
    %167 = vector.broadcast %cst_32 : f32 to vector<8x128xf32>
    %168 = arith.select %164, %166, %167 : vector<8x128xi1>, vector<8x128xf32>
    %169 = arith.addf %160, %168 : vector<8x128xf32>
    %170 = vector.extract_strided_slice %88 {offsets = [0, 8], sizes = [8, 1], strides = [1, 1]} : vector<8x16xi32> to vector<8x1xi32>
    %171 = vector.extract_strided_slice %95 {offsets = [0, 8], sizes = [8, 1], strides = [1, 1]} : vector<8x16xf32> to vector<8x1xf32>
    %172 = vector.broadcast %170 : vector<8x1xi32> to vector<8x128xi32>
    %173 = arith.cmpi eq, %172, %96 : vector<8x128xi32>
    %cst_33 = arith.constant 0.000000e+00 : f32
    %174 = vector.shape_cast %171 : vector<8x1xf32> to vector<8x1xf32>
    %175 = vector.broadcast %174 : vector<8x1xf32> to vector<8x128xf32>
    %176 = vector.broadcast %cst_33 : f32 to vector<8x128xf32>
    %177 = arith.select %173, %175, %176 : vector<8x128xi1>, vector<8x128xf32>
    %178 = arith.addf %169, %177 : vector<8x128xf32>
    %179 = vector.extract_strided_slice %88 {offsets = [0, 9], sizes = [8, 1], strides = [1, 1]} : vector<8x16xi32> to vector<8x1xi32>
    %180 = vector.extract_strided_slice %95 {offsets = [0, 9], sizes = [8, 1], strides = [1, 1]} : vector<8x16xf32> to vector<8x1xf32>
    %181 = vector.broadcast %179 : vector<8x1xi32> to vector<8x128xi32>
    %182 = arith.cmpi eq, %181, %96 : vector<8x128xi32>
    %cst_34 = arith.constant 0.000000e+00 : f32
    %183 = vector.shape_cast %180 : vector<8x1xf32> to vector<8x1xf32>
    %184 = vector.broadcast %183 : vector<8x1xf32> to vector<8x128xf32>
    %185 = vector.broadcast %cst_34 : f32 to vector<8x128xf32>
    %186 = arith.select %182, %184, %185 : vector<8x128xi1>, vector<8x128xf32>
    %187 = arith.addf %178, %186 : vector<8x128xf32>
    %188 = vector.extract_strided_slice %88 {offsets = [0, 10], sizes = [8, 1], strides = [1, 1]} : vector<8x16xi32> to vector<8x1xi32>
    %189 = vector.extract_strided_slice %95 {offsets = [0, 10], sizes = [8, 1], strides = [1, 1]} : vector<8x16xf32> to vector<8x1xf32>
    %190 = vector.broadcast %188 : vector<8x1xi32> to vector<8x128xi32>
    %191 = arith.cmpi eq, %190, %96 : vector<8x128xi32>
    %cst_35 = arith.constant 0.000000e+00 : f32
    %192 = vector.shape_cast %189 : vector<8x1xf32> to vector<8x1xf32>
    %193 = vector.broadcast %192 : vector<8x1xf32> to vector<8x128xf32>
    %194 = vector.broadcast %cst_35 : f32 to vector<8x128xf32>
    %195 = arith.select %191, %193, %194 : vector<8x128xi1>, vector<8x128xf32>
    %196 = arith.addf %187, %195 : vector<8x128xf32>
    %197 = vector.extract_strided_slice %88 {offsets = [0, 11], sizes = [8, 1], strides = [1, 1]} : vector<8x16xi32> to vector<8x1xi32>
    %198 = vector.extract_strided_slice %95 {offsets = [0, 11], sizes = [8, 1], strides = [1, 1]} : vector<8x16xf32> to vector<8x1xf32>
    %199 = vector.broadcast %197 : vector<8x1xi32> to vector<8x128xi32>
    %200 = arith.cmpi eq, %199, %96 : vector<8x128xi32>
    %cst_36 = arith.constant 0.000000e+00 : f32
    %201 = vector.shape_cast %198 : vector<8x1xf32> to vector<8x1xf32>
    %202 = vector.broadcast %201 : vector<8x1xf32> to vector<8x128xf32>
    %203 = vector.broadcast %cst_36 : f32 to vector<8x128xf32>
    %204 = arith.select %200, %202, %203 : vector<8x128xi1>, vector<8x128xf32>
    %205 = arith.addf %196, %204 : vector<8x128xf32>
    %206 = vector.extract_strided_slice %88 {offsets = [0, 12], sizes = [8, 1], strides = [1, 1]} : vector<8x16xi32> to vector<8x1xi32>
    %207 = vector.extract_strided_slice %95 {offsets = [0, 12], sizes = [8, 1], strides = [1, 1]} : vector<8x16xf32> to vector<8x1xf32>
    %208 = vector.broadcast %206 : vector<8x1xi32> to vector<8x128xi32>
    %209 = arith.cmpi eq, %208, %96 : vector<8x128xi32>
    %cst_37 = arith.constant 0.000000e+00 : f32
    %210 = vector.shape_cast %207 : vector<8x1xf32> to vector<8x1xf32>
    %211 = vector.broadcast %210 : vector<8x1xf32> to vector<8x128xf32>
    %212 = vector.broadcast %cst_37 : f32 to vector<8x128xf32>
    %213 = arith.select %209, %211, %212 : vector<8x128xi1>, vector<8x128xf32>
    %214 = arith.addf %205, %213 : vector<8x128xf32>
    %215 = vector.extract_strided_slice %88 {offsets = [0, 13], sizes = [8, 1], strides = [1, 1]} : vector<8x16xi32> to vector<8x1xi32>
    %216 = vector.extract_strided_slice %95 {offsets = [0, 13], sizes = [8, 1], strides = [1, 1]} : vector<8x16xf32> to vector<8x1xf32>
    %217 = vector.broadcast %215 : vector<8x1xi32> to vector<8x128xi32>
    %218 = arith.cmpi eq, %217, %96 : vector<8x128xi32>
    %cst_38 = arith.constant 0.000000e+00 : f32
    %219 = vector.shape_cast %216 : vector<8x1xf32> to vector<8x1xf32>
    %220 = vector.broadcast %219 : vector<8x1xf32> to vector<8x128xf32>
    %221 = vector.broadcast %cst_38 : f32 to vector<8x128xf32>
    %222 = arith.select %218, %220, %221 : vector<8x128xi1>, vector<8x128xf32>
    %223 = arith.addf %214, %222 : vector<8x128xf32>
    %224 = vector.extract_strided_slice %88 {offsets = [0, 14], sizes = [8, 1], strides = [1, 1]} : vector<8x16xi32> to vector<8x1xi32>
    %225 = vector.extract_strided_slice %95 {offsets = [0, 14], sizes = [8, 1], strides = [1, 1]} : vector<8x16xf32> to vector<8x1xf32>
    %226 = vector.broadcast %224 : vector<8x1xi32> to vector<8x128xi32>
    %227 = arith.cmpi eq, %226, %96 : vector<8x128xi32>
    %cst_39 = arith.constant 0.000000e+00 : f32
    %228 = vector.shape_cast %225 : vector<8x1xf32> to vector<8x1xf32>
    %229 = vector.broadcast %228 : vector<8x1xf32> to vector<8x128xf32>
    %230 = vector.broadcast %cst_39 : f32 to vector<8x128xf32>
    %231 = arith.select %227, %229, %230 : vector<8x128xi1>, vector<8x128xf32>
    %232 = arith.addf %223, %231 : vector<8x128xf32>
    %233 = vector.extract_strided_slice %88 {offsets = [0, 15], sizes = [8, 1], strides = [1, 1]} : vector<8x16xi32> to vector<8x1xi32>
    %234 = vector.extract_strided_slice %95 {offsets = [0, 15], sizes = [8, 1], strides = [1, 1]} : vector<8x16xf32> to vector<8x1xf32>
    %235 = vector.broadcast %233 : vector<8x1xi32> to vector<8x128xi32>
    %236 = arith.cmpi eq, %235, %96 : vector<8x128xi32>
    %cst_40 = arith.constant 0.000000e+00 : f32
    %237 = vector.shape_cast %234 : vector<8x1xf32> to vector<8x1xf32>
    %238 = vector.broadcast %237 : vector<8x1xf32> to vector<8x128xf32>
    %239 = vector.broadcast %cst_40 : f32 to vector<8x128xf32>
    %240 = arith.select %236, %238, %239 : vector<8x128xi1>, vector<8x128xf32>
    %241 = arith.addf %232, %240 : vector<8x128xf32>
    %c0_41 = arith.constant 0 : index
    %c0_42 = arith.constant 0 : index
    %242 = vector.load %arg6[%c0_41, %c0_42] : memref<128x128xf32, #tpu.memory_space<vmem>>, vector<128x128xf32>
    %cst_43 = arith.constant dense<0.000000e+00> : vector<8x128xf32>
    %243 = tpu.matmul %241, %242, %cst_43 {dimension_numbers = #tpu.dot_dimension_numbers<[1], [0], [0], [1], [0, 0, 1, 1], [], []>} : vector<8x128xf32>, vector<128x128xf32>, vector<8x128xf32> -> vector<8x128xf32>
    %c0_44 = arith.constant 0 : index
    %c0_45 = arith.constant 0 : index
    %244 = vector.load %arg7[%c0_44, %c0_45] : memref<1x128xf32, #tpu.memory_space<vmem>>, vector<1x128xf32>
    %245 = vector.broadcast %244 : vector<1x128xf32> to vector<8x128xf32>
    %246 = arith.addf %243, %245 : vector<8x128xf32>
    %247 = math.tanh %246 : vector<8x128xf32>
    %c0_46 = arith.constant 0 : index
    %c0_47 = arith.constant 0 : index
    %248 = vector.load %arg8[%c0_46, %c0_47] : memref<8x128xf32, #tpu.memory_space<vmem>>, vector<8x128xf32>
    tpu.vector_store %arg8[%c0_46, %c0_47], %87 {strides = array<i32>} : memref<8x128xf32, #tpu.memory_space<vmem>>, vector<8x128xf32>,
    %c0_48 = arith.constant 0 : index
    %c0_49 = arith.constant 0 : index
    %249 = vector.load %arg9[%c0_48, %c0_49] : memref<8x128xf32, #tpu.memory_space<vmem>>, vector<8x128xf32>
    tpu.vector_store %arg9[%c0_48, %c0_49], %247 {strides = array<i32>} : memref<8x128xf32, #tpu.memory_space<vmem>>, vector<8x128xf32>,
    return
  }
}

</mosaic_0001>

<llo_original>
// kernel: _retriever_call.1
$region0: #{_retriever_call.1}
  #allocation0 [shape = 'u32[]', space=smem, size = 0x4, offset = 0x4, fixed_abs, tag = 'smem constant byte address 0x4 - core index']
  #allocation1 [shape = 'u32[144,128]{1,0:T(1,128)}', space=vmem, size = 0x12000, scoped, tag = 'internal scratch']
  %s0 = inlined_call_operand.vmem [shape: s32[8,8], index: 0, kind: input, shape index: {}]
  %s1 = inlined_call_operand.vmem [shape: f32[8,8], index: 1, kind: input, shape index: {}]
  %s2 = inlined_call_operand.vmem [shape: s32[8,16], index: 2, kind: input, shape index: {}]
  %s3 = inlined_call_operand.vmem [shape: f32[8,16], index: 3, kind: input, shape index: {}]
  %s4 = inlined_call_operand.hbm [shape: f32[128,128], index: 4, kind: input, shape index: {}]
  %s5 = inlined_call_operand.vmem [shape: f32[1,128], index: 5, kind: input, shape index: {}]
  %s6 = inlined_call_operand.hbm [shape: f32[128,128], index: 6, kind: input, shape index: {}]
  %s7 = inlined_call_operand.vmem [shape: f32[1,128], index: 7, kind: input, shape index: {}]
  %s8 = inlined_call_operand.vmem [shape: f32[8,128], index: 8, kind: output, shape index: {0}]
  %s9 = inlined_call_operand.hbm [shape: f32[8,128], index: 9, kind: output, shape index: {1}]
  %10 = xla_tuple %s8, %s9
  %s11 = sld [smem:[#allocation0]]
  $region58: #{_retriever_call.1} parent=0
    _
  %s13 = ssub.s32 1, %s11
  %s14 = scalar_select 0, %s13, %s11
  $region1: #{_retriever_call.1} parent=0
    #allocation2 [shape = 'u8[65536]{0}', space=vmem, size = 0x10000, scoped, tag = 'input window, operand 4, single buffered']
    #allocation3 [shape = 's32[1]{0}', space=sflag, size = 0x4, scoped, tag = 'scoped memory for _retriever_call.1']
    #allocation4 [shape = 's32[1]{0}', space=sflag, size = 0x4, scoped, tag = 'scoped memory for _retriever_call.1']
    #allocation5 [shape = 'u8[65536]{0}', space=vmem, size = 0x10000, scoped, tag = 'input window, operand 6, single buffered']
    #allocation6 [shape = 's32[1]{0}', space=sflag, size = 0x4, scoped, tag = 'scoped memory for _retriever_call.1']
    #allocation7 [shape = 'u8[4096]{0}', space=vmem, size = 0x1000, scoped, tag = 'output window, operand 1, single buffered']
    %15 = vsyncpa [#allocation3], 0
    %16 = vsyncpa [#allocation6], 0
    %17 = vsyncpa [#allocation4], 0
    // Predicated region
    $region2: #{_retriever_call.1} parent=1 // pred_check
      _
    $region3: #{_retriever_call.1} parent=1 // pred_check_branch
      %19 = sbr.rel (0) target = $region5
    $region4: #{_retriever_call.1} parent=1 // pred_region
      _
    $region5: #{_retriever_call.1} parent=1 // pred_fallthru
      _
    // Predicated region
    $region6: #{_retriever_call.1} parent=1 // pred_check
      _
    $region7: #{_retriever_call.1} parent=1 // pred_check_branch
      %21 = sbr.rel (0) target = $region9
    $region8: #{_retriever_call.1} parent=1 // pred_region
      _
    $region9: #{_retriever_call.1} parent=1 // pred_fallthru
      _
    // Predicated region
    $region10: #{_retriever_call.1} parent=1 // pred_check
      _
    $region11: #{_retriever_call.1} parent=1 // pred_check_branch
      %23 = sbr.rel (0) target = $region13
    $region12: #{_retriever_call.1} parent=1 // pred_region
      _
    $region13: #{_retriever_call.1} parent=1 // pred_fallthru
      _
    // Predicated region
    $region14: #{_retriever_call.1} parent=1 // pred_check
      _
    $region15: #{_retriever_call.1} parent=1 // pred_check_branch
      %25 = sbr.rel (0) target = $region17
    $region16: #{_retriever_call.1} parent=1 // pred_region
      _
    $region17: #{_retriever_call.1} parent=1 // pred_fallthru
      _
    // Predicated region
    $region18: #{_retriever_call.1} parent=1 // pred_check
      _
    $region19: #{_retriever_call.1} parent=1 // pred_check_branch
      %27 = sbr.rel (0) target = $region21
    $region20: #{_retriever_call.1} parent=1 // pred_region
      %s29 = ssub.s32 2048, 2048
      %30 = vsyncadd [#allocation3], %s29
      %s31 = sshll.u32 [#allocation2], 4
      %s32 = int_to_ptr.vmem [resolvable:$true] %s31
      %37 = dma.hbm_to_vmem [thread:$0]  %s4, 2048, %s32, [#allocation3], 128, 128, 8
    $region21: #{_retriever_call.1} parent=1 // pred_fallthru
      _
    // Predicated region
    $region22: #{_retriever_call.1} parent=1 // pred_check
      _
    $region23: #{_retriever_call.1} parent=1 // pred_check_branch
      %39 = sbr.rel (0) target = $region25
    $region24: #{_retriever_call.1} parent=1 // pred_region
      _
    $region25: #{_retriever_call.1} parent=1 // pred_fallthru
      _
    // Predicated region
    $region26: #{_retriever_call.1} parent=1 // pred_check
      _
    $region27: #{_retriever_call.1} parent=1 // pred_check_branch
      %41 = sbr.rel (0) target = $region29
    $region28: #{_retriever_call.1} parent=1 // pred_region
      %s43 = ssub.s32 2048, 2048
      %44 = vsyncadd [#allocation6], %s43
      %s45 = sshll.u32 [#allocation5], 4
      %s46 = int_to_ptr.vmem [resolvable:$true] %s45
      %51 = dma.hbm_to_vmem [thread:$0]  %s6, 2048, %s46, [#allocation6], 128, 128, 8
    $region29: #{_retriever_call.1} parent=1 // pred_fallthru
      _
    // Predicated region
    $region30: #{_retriever_call.1} parent=1 // pred_check
      _
    $region31: #{_retriever_call.1} parent=1 // pred_check_branch
      %53 = sbr.rel (0) target = $region33
    $region32: #{_retriever_call.1} parent=1 // pred_region
      _
    $region33: #{_retriever_call.1} parent=1 // pred_fallthru
      _
    // Predicated region
    $region34: #{_retriever_call.1} parent=1 // pred_check
      _
    $region35: #{_retriever_call.1} parent=1 // pred_check_branch
      %55 = sbr.rel (0) target = $region37
    $region36: #{_retriever_call.1} parent=1 // pred_region
      %56 = dma.done [#allocation3], 2048
    $region37: #{_retriever_call.1} parent=1 // pred_fallthru
      _
    // Predicated region
    $region38: #{_retriever_call.1} parent=1 // pred_check
      _
    $region39: #{_retriever_call.1} parent=1 // pred_check_branch
      %58 = sbr.rel (0) target = $region41
    $region40: #{_retriever_call.1} parent=1 // pred_region
      %59 = dma.done [#allocation6], 2048
    $region41: #{_retriever_call.1} parent=1 // pred_fallthru
      _
    %v60 = vld [vmem:[%s0] sm:$0xff]
    %v61 = vld [vmem:[%s1] sm:$0xff]
    %vm62 = vcmask 64512
    %v63 = vsel %vm62, %v61, 0.0
    %64 = vadd.xlane.f32.xlu0 %v63
    %v65 = vpop.xlane.xlu0 %64
    %v66 = vmax.f32 %v65, 1.0
    %v67 = vrcp.pop %v66
    %v68 = vmul.f32 %v61, %v67
    %v69 = vlaneseq
    %v70 = vand.u32 %v69, 127
    %71 = vset.pattern.permute.xlu0 0
    %72 = vperm.xlu0 %71, %v60
    %v73 = vpop.permute.xlu0 %72
    %vm74 = vcmp.eq.s32.totalorder %v73, %v70
    %76 = vset.pattern.permute.xlu0 0
    %77 = vperm.xlu0 %76, %v68
    %v78 = vpop.permute.xlu0 %77
    %v80 = vsel %vm74, %v78, 0.0
    %v81 = vadd.f32 %v80, 0.0
    %82 = vset.pattern.permute.xlu0 1
    %83 = vperm.xlu0 %82, %v60
    %v84 = vpop.permute.xlu0 %83
    %vm85 = vcmp.eq.s32.totalorder %v84, %v70
    %86 = vset.pattern.permute.xlu0 1
    %87 = vperm.xlu0 %86, %v68
    %v88 = vpop.permute.xlu0 %87
    %v90 = vsel %vm85, %v88, 0.0
    %v91 = vadd.f32 %v81, %v90
    %92 = vset.pattern.permute.xlu0 2
    %93 = vperm.xlu0 %92, %v60
    %v94 = vpop.permute.xlu0 %93
    %vm95 = vcmp.eq.s32.totalorder %v94, %v70
    %96 = vset.pattern.permute.xlu0 2
    %97 = vperm.xlu0 %96, %v68
    %v98 = vpop.permute.xlu0 %97
    %v100 = vsel %vm95, %v98, 0.0
    %v101 = vadd.f32 %v91, %v100
    %102 = vset.pattern.permute.xlu0 3
    %103 = vperm.xlu0 %102, %v60
    %v104 = vpop.permute.xlu0 %103
    %vm105 = vcmp.eq.s32.totalorder %v104, %v70
    %106 = vset.pattern.permute.xlu0 3
    %107 = vperm.xlu0 %106, %v68
    %v108 = vpop.permute.xlu0 %107
    %v110 = vsel %vm105, %v108, 0.0
    %v111 = vadd.f32 %v101, %v110
    %112 = vset.pattern.permute.xlu0 4
    %113 = vperm.xlu0 %112, %v60
    %v114 = vpop.permute.xlu0 %113
    %vm115 = vcmp.eq.s32.totalorder %v114, %v70
    %116 = vset.pattern.permute.xlu0 4
    %117 = vperm.xlu0 %116, %v68
    %v118 = vpop.permute.xlu0 %117
    %v120 = vsel %vm115, %v118, 0.0
    %v121 = vadd.f32 %v111, %v120
    %122 = vset.pattern.permute.xlu0 5
    %123 = vperm.xlu0 %122, %v60
    %v124 = vpop.permute.xlu0 %123
    %vm125 = vcmp.eq.s32.totalorder %v124, %v70
    %126 = vset.pattern.permute.xlu0 5
    %127 = vperm.xlu0 %126, %v68
    %v128 = vpop.permute.xlu0 %127
    %v130 = vsel %vm125, %v128, 0.0
    %v131 = vadd.f32 %v121, %v130
    %132 = vset.pattern.permute.xlu0 6
    %133 = vperm.xlu0 %132, %v60
    %v134 = vpop.permute.xlu0 %133
    %vm135 = vcmp.eq.s32.totalorder %v134, %v70
    %136 = vset.pattern.permute.xlu0 6
    %137 = vperm.xlu0 %136, %v68
    %v138 = vpop.permute.xlu0 %137
    %v140 = vsel %vm135, %v138, 0.0
    %v141 = vadd.f32 %v131, %v140
    %142 = vset.pattern.permute.xlu0 7
    %143 = vperm.xlu0 %142, %v60
    %v144 = vpop.permute.xlu0 %143
    %vm145 = vcmp.eq.s32.totalorder %v144, %v70
    %146 = vset.pattern.permute.xlu0 7
    %147 = vperm.xlu0 %146, %v68
    %v148 = vpop.permute.xlu0 %147
    %v150 = vsel %vm145, %v148, 0.0
    %v151 = vadd.f32 %v141, %v150
    %v152 = vld [vmem:[#allocation2] sm:$0xff]
    %v153 = vld [vmem:[#allocation2 + $0x8] sm:$0xff]
    %v154 = vld [vmem:[#allocation2 + $0x10] sm:$0xff]
    %v155 = vld [vmem:[#allocation2 + $0x18] sm:$0xff]
    %v156 = vld [vmem:[#allocation2 + $0x20] sm:$0xff]
    %v157 = vld [vmem:[#allocation2 + $0x28] sm:$0xff]
    %v158 = vld [vmem:[#allocation2 + $0x30] sm:$0xff]
    %v159 = vld [vmem:[#allocation2 + $0x38] sm:$0xff]
    %v160 = vld [vmem:[#allocation2 + $0x40] sm:$0xff]
    %v161 = vld [vmem:[#allocation2 + $0x48] sm:$0xff]
    %v162 = vld [vmem:[#allocation2 + $0x50] sm:$0xff]
    %v163 = vld [vmem:[#allocation2 + $0x58] sm:$0xff]
    %v164 = vld [vmem:[#allocation2 + $0x60] sm:$0xff]
    %v165 = vld [vmem:[#allocation2 + $0x68] sm:$0xff]
    %v166 = vld [vmem:[#allocation2 + $0x70] sm:$0xff]
    %v167 = vld [vmem:[#allocation2 + $0x78] sm:$0xff]
    %v168 = vld [vmem:[%s5] sm:$0x1]
    %v170 = vlaneseq
    %v171 = vshrl.u32 %v170, 7
    %v172 = vsub.s32 0, %v171
    %v173 = vrot.slane %v168, %v172
    %175 = vmatprep.subr.mxu0 0.0
    %176 = vmatpush1.msra.mxu0 %v152
    %177 = vmatprep.subr.mxu0 0.0
    %178 = vmatpush1.msra.mxu0 %v153
    %179 = vmatprep.subr.mxu0 0.0
    %180 = vmatpush1.msra.mxu0 %v154
    %181 = vmatprep.subr.mxu0 0.0
    %182 = vmatpush1.msra.mxu0 %v155
    %183 = vmatprep.subr.mxu0 0.0
    %184 = vmatpush1.msra.mxu0 %v156
    %185 = vmatprep.subr.mxu0 0.0
    %186 = vmatpush1.msra.mxu0 %v157
    %187 = vmatprep.subr.mxu0 0.0
    %188 = vmatpush1.msra.mxu0 %v158
    %189 = vmatprep.subr.mxu0 0.0
    %190 = vmatpush1.msra.mxu0 %v159
    %191 = vmatprep.subr.mxu0 0.0
    %192 = vmatpush1.msra.mxu0 %v160
    %193 = vmatprep.subr.mxu0 0.0
    %194 = vmatpush1.msra.mxu0 %v161
    %195 = vmatprep.subr.mxu0 0.0
    %196 = vmatpush1.msra.mxu0 %v162
    %197 = vmatprep.subr.mxu0 0.0
    %198 = vmatpush1.msra.mxu0 %v163
    %199 = vmatprep.subr.mxu0 0.0
    %200 = vmatpush1.msra.mxu0 %v164
    %201 = vmatprep.subr.mxu0 0.0
    %202 = vmatpush1.msra.mxu0 %v165
    %203 = vmatprep.subr.mxu0 0.0
    %204 = vmatpush1.msra.mxu0 %v166
    %205 = vmatprep.subr.mxu0 0.0
    %206 = vmatpush1.msra.mxu0 %v167
    %207 = vmatprep.subr.mxu0 0.0
    %208 = vmatpush1.msra.mxu0 0.0
    %209 = vmatprep.subr.mxu0 0.0
    %210 = vmatpush1.msra.mxu0 0.0
    %211 = vmatprep.subr.mxu0 0.0
    %212 = vmatpush1.msra.mxu0 0.0
    %213 = vmatprep.subr.mxu0 0.0
    %214 = vmatpush1.msra.mxu0 0.0
    %215 = vmatprep.subr.mxu0 0.0
    %216 = vmatpush1.msra.mxu0 0.0
    %217 = vmatprep.subr.mxu0 0.0
    %218 = vmatpush1.msra.mxu0 0.0
    %219 = vmatprep.subr.mxu0 0.0
    %220 = vmatpush1.msra.mxu0 0.0
    %221 = vmatprep.subr.mxu0 0.0
    %222 = vmatpush1.msra.mxu0 0.0
    %223 = vmatprep.subr.mxu0 0.0
    %224 = vmatpush1.msra.mxu0 0.0
    %225 = vmatprep.subr.mxu0 0.0
    %226 = vmatpush1.msra.mxu0 0.0
    %227 = vmatprep.subr.mxu0 0.0
    %228 = vmatpush1.msra.mxu0 0.0
    %229 = vmatprep.subr.mxu0 0.0
    %230 = vmatpush1.msra.mxu0 0.0
    %231 = vmatprep.subr.mxu0 0.0
    %232 = vmatpush1.msra.mxu0 0.0
    %233 = vmatprep.subr.mxu0 0.0
    %234 = vmatpush1.msra.mxu0 0.0
    %235 = vmatprep.subr.mxu0 0.0
    %236 = vmatpush1.msra.mxu0 0.0
    %237 = vmatprep.subr.mxu0 0.0
    %238 = vmatpush1.msra.mxu0 0.0
    %239 = vmatprep.mubr.f32.mxu0 0.0
    %240 = vmatmul.mubr.f32.gmra.mrb[0].mxu0 %v151
    %v241 = vpop.f32.mrb[0].mxu0
    %v242 = vadd.f32 %v173, %v241
    %v243 = vpop.f32.mrb[0].mxu0
    %244 = vdwg.mxu0
    %v245 = vtanh.pop %v242
    %v246 = vld [vmem:[%s2] sm:$0xff]
    %v247 = vld [vmem:[%s3] sm:$0xff]
    %vm248 = vcmask 130048
    %v249 = vsel %vm248, %v247, 0.0
    %250 = vadd.xlane.f32.xlu0 %v249
    %v251 = vpop.xlane.xlu0 %250
    %v252 = vmax.f32 %v251, 1.0
    %v253 = vrcp.pop %v252
    %v254 = vmul.f32 %v247, %v253
    %255 = vset.pattern.permute.xlu0 0
    %256 = vperm.xlu0 %255, %v246
    %v257 = vpop.permute.xlu0 %256
    %vm258 = vcmp.eq.s32.totalorder %v257, %v70
    %260 = vset.pattern.permute.xlu0 0
    %261 = vperm.xlu0 %260, %v254
    %v262 = vpop.permute.xlu0 %261
    %v264 = vsel %vm258, %v262, 0.0
    %v265 = vadd.f32 %v264, 0.0
    %266 = vset.pattern.permute.xlu0 1
    %267 = vperm.xlu0 %266, %v246
    %v268 = vpop.permute.xlu0 %267
    %vm269 = vcmp.eq.s32.totalorder %v268, %v70
    %270 = vset.pattern.permute.xlu0 1
    %271 = vperm.xlu0 %270, %v254
    %v272 = vpop.permute.xlu0 %271
    %v274 = vsel %vm269, %v272, 0.0
    %v275 = vadd.f32 %v265, %v274
    %276 = vset.pattern.permute.xlu0 2
    %277 = vperm.xlu0 %276, %v246
    %v278 = vpop.permute.xlu0 %277
    %vm279 = vcmp.eq.s32.totalorder %v278, %v70
    %280 = vset.pattern.permute.xlu0 2
    %281 = vperm.xlu0 %280, %v254
    %v282 = vpop.permute.xlu0 %281
    %v284 = vsel %vm279, %v282, 0.0
    %v285 = vadd.f32 %v275, %v284
    %286 = vset.pattern.permute.xlu0 3
    %287 = vperm.xlu0 %286, %v246
    %v288 = vpop.permute.xlu0 %287
    %vm289 = vcmp.eq.s32.totalorder %v288, %v70
    %290 = vset.pattern.permute.xlu0 3
    %291 = vperm.xlu0 %290, %v254
    %v292 = vpop.permute.xlu0 %291
    %v294 = vsel %vm289, %v292, 0.0
    %v295 = vadd.f32 %v285, %v294
    %296 = vset.pattern.permute.xlu0 4
    %297 = vperm.xlu0 %296, %v246
    %v298 = vpop.permute.xlu0 %297
    %vm299 = vcmp.eq.s32.totalorder %v298, %v70
    %300 = vset.pattern.permute.xlu0 4
    %301 = vperm.xlu0 %300, %v254
    %v302 = vpop.permute.xlu0 %301
    %v304 = vsel %vm299, %v302, 0.0
    %v305 = vadd.f32 %v295, %v304
    %306 = vset.pattern.permute.xlu0 5
    %307 = vperm.xlu0 %306, %v246
    %v308 = vpop.permute.xlu0 %307
    %vm309 = vcmp.eq.s32.totalorder %v308, %v70
    %310 = vset.pattern.permute.xlu0 5
    %311 = vperm.xlu0 %310, %v254
    %v312 = vpop.permute.xlu0 %311
    %v314 = vsel %vm309, %v312, 0.0
    %v315 = vadd.f32 %v305, %v314
    %316 = vset.pattern.permute.xlu0 6
    %317 = vperm.xlu0 %316, %v246
    %v318 = vpop.permute.xlu0 %317
    %vm319 = vcmp.eq.s32.totalorder %v318, %v70
    %320 = vset.pattern.permute.xlu0 6
    %321 = vperm.xlu0 %320, %v254
    %v322 = vpop.permute.xlu0 %321
    %v324 = vsel %vm319, %v322, 0.0
    %v325 = vadd.f32 %v315, %v324
    %326 = vset.pattern.permute.xlu0 7
    %327 = vperm.xlu0 %326, %v246
    %v328 = vpop.permute.xlu0 %327
    %vm329 = vcmp.eq.s32.totalorder %v328, %v70
    %330 = vset.pattern.permute.xlu0 7
    %331 = vperm.xlu0 %330, %v254
    %v332 = vpop.permute.xlu0 %331
    %v334 = vsel %vm329, %v332, 0.0
    %v335 = vadd.f32 %v325, %v334
    %336 = vset.pattern.permute.xlu0 8
    %337 = vperm.xlu0 %336, %v246
    %v338 = vpop.permute.xlu0 %337
    %vm339 = vcmp.eq.s32.totalorder %v338, %v70
    %340 = vset.pattern.permute.xlu0 8
    %341 = vperm.xlu0 %340, %v254
    %v342 = vpop.permute.xlu0 %341
    %v344 = vsel %vm339, %v342, 0.0
    %v345 = vadd.f32 %v335, %v344
    %346 = vset.pattern.permute.xlu0 9
    %347 = vperm.xlu0 %346, %v246
    %v348 = vpop.permute.xlu0 %347
    %vm349 = vcmp.eq.s32.totalorder %v348, %v70
    %350 = vset.pattern.permute.xlu0 9
    %351 = vperm.xlu0 %350, %v254
    %v352 = vpop.permute.xlu0 %351
    %v354 = vsel %vm349, %v352, 0.0
    %v355 = vadd.f32 %v345, %v354
    %356 = vset.pattern.permute.xlu0 10
    %357 = vperm.xlu0 %356, %v246
    %v358 = vpop.permute.xlu0 %357
    %vm359 = vcmp.eq.s32.totalorder %v358, %v70
    %360 = vset.pattern.permute.xlu0 10
    %361 = vperm.xlu0 %360, %v254
    %v362 = vpop.permute.xlu0 %361
    %v364 = vsel %vm359, %v362, 0.0
    %v365 = vadd.f32 %v355, %v364
    %366 = vset.pattern.permute.xlu0 11
    %367 = vperm.xlu0 %366, %v246
    %v368 = vpop.permute.xlu0 %367
    %vm369 = vcmp.eq.s32.totalorder %v368, %v70
    %370 = vset.pattern.permute.xlu0 11
    %371 = vperm.xlu0 %370, %v254
    %v372 = vpop.permute.xlu0 %371
    %v374 = vsel %vm369, %v372, 0.0
    %v375 = vadd.f32 %v365, %v374
    %376 = vset.pattern.permute.xlu0 12
    %377 = vperm.xlu0 %376, %v246
    %v378 = vpop.permute.xlu0 %377
    %vm379 = vcmp.eq.s32.totalorder %v378, %v70
    %380 = vset.pattern.permute.xlu0 12
    %381 = vperm.xlu0 %380, %v254
    %v382 = vpop.permute.xlu0 %381
    %v384 = vsel %vm379, %v382, 0.0
    %v385 = vadd.f32 %v375, %v384
    %386 = vset.pattern.permute.xlu0 13
    %387 = vperm.xlu0 %386, %v246
    %v388 = vpop.permute.xlu0 %387
    %vm389 = vcmp.eq.s32.totalorder %v388, %v70
    %390 = vset.pattern.permute.xlu0 13
    %391 = vperm.xlu0 %390, %v254
    %v392 = vpop.permute.xlu0 %391
    %v394 = vsel %vm389, %v392, 0.0
    %v395 = vadd.f32 %v385, %v394
    %396 = vset.pattern.permute.xlu0 14
    %397 = vperm.xlu0 %396, %v246
    %v398 = vpop.permute.xlu0 %397
    %vm399 = vcmp.eq.s32.totalorder %v398, %v70
    %400 = vset.pattern.permute.xlu0 14
    %401 = vperm.xlu0 %400, %v254
    %v402 = vpop.permute.xlu0 %401
    %v404 = vsel %vm399, %v402, 0.0
    %v405 = vadd.f32 %v395, %v404
    %406 = vset.pattern.permute.xlu0 15
    %407 = vperm.xlu0 %406, %v246
    %v408 = vpop.permute.xlu0 %407
    %vm409 = vcmp.eq.s32.totalorder %v408, %v70
    %410 = vset.pattern.permute.xlu0 15
    %411 = vperm.xlu0 %410, %v254
    %v412 = vpop.permute.xlu0 %411
    %v414 = vsel %vm409, %v412, 0.0
    %v415 = vadd.f32 %v405, %v414
    %v416 = vld [vmem:[#allocation5] sm:$0xff]
    %v417 = vld [vmem:[#allocation5 + $0x8] sm:$0xff]
    %v418 = vld [vmem:[#allocation5 + $0x10] sm:$0xff]
    %v419 = vld [vmem:[#allocation5 + $0x18] sm:$0xff]
    %v420 = vld [vmem:[#allocation5 + $0x20] sm:$0xff]
    %v421 = vld [vmem:[#allocation5 + $0x28] sm:$0xff]
    %v422 = vld [vmem:[#allocation5 + $0x30] sm:$0xff]
    %v423 = vld [vmem:[#allocation5 + $0x38] sm:$0xff]
    %v424 = vld [vmem:[#allocation5 + $0x40] sm:$0xff]
    %v425 = vld [vmem:[#allocation5 + $0x48] sm:$0xff]
    %v426 = vld [vmem:[#allocation5 + $0x50] sm:$0xff]
    %v427 = vld [vmem:[#allocation5 + $0x58] sm:$0xff]
    %v428 = vld [vmem:[#allocation5 + $0x60] sm:$0xff]
    %v429 = vld [vmem:[#allocation5 + $0x68] sm:$0xff]
    %v430 = vld [vmem:[#allocation5 + $0x70] sm:$0xff]
    %v431 = vld [vmem:[#allocation5 + $0x78] sm:$0xff]
    %v432 = vld [vmem:[%s7] sm:$0x1]
    %v434 = vlaneseq
    %v435 = vshrl.u32 %v434, 7
    %v436 = vsub.s32 0, %v435
    %v437 = vrot.slane %v432, %v436
    %439 = vmatprep.subr.mxu0 0.0
    %440 = vmatpush1.msra.mxu0 %v416
    %441 = vmatprep.subr.mxu0 0.0
    %442 = vmatpush1.msra.mxu0 %v417
    %443 = vmatprep.subr.mxu0 0.0
    %444 = vmatpush1.msra.mxu0 %v418
    %445 = vmatprep.subr.mxu0 0.0
    %446 = vmatpush1.msra.mxu0 %v419
    %447 = vmatprep.subr.mxu0 0.0
    %448 = vmatpush1.msra.mxu0 %v420
    %449 = vmatprep.subr.mxu0 0.0
    %450 = vmatpush1.msra.mxu0 %v421
    %451 = vmatprep.subr.mxu0 0.0
    %452 = vmatpush1.msra.mxu0 %v422
    %453 = vmatprep.subr.mxu0 0.0
    %454 = vmatpush1.msra.mxu0 %v423
    %455 = vmatprep.subr.mxu0 0.0
    %456 = vmatpush1.msra.mxu0 %v424
    %457 = vmatprep.subr.mxu0 0.0
    %458 = vmatpush1.msra.mxu0 %v425
    %459 = vmatprep.subr.mxu0 0.0
    %460 = vmatpush1.msra.mxu0 %v426
    %461 = vmatprep.subr.mxu0 0.0
    %462 = vmatpush1.msra.mxu0 %v427
    %463 = vmatprep.subr.mxu0 0.0
    %464 = vmatpush1.msra.mxu0 %v428
    %465 = vmatprep.subr.mxu0 0.0
    %466 = vmatpush1.msra.mxu0 %v429
    %467 = vmatprep.subr.mxu0 0.0
    %468 = vmatpush1.msra.mxu0 %v430
    %469 = vmatprep.subr.mxu0 0.0
    %470 = vmatpush1.msra.mxu0 %v431
    %471 = vmatprep.subr.mxu0 0.0
    %472 = vmatpush1.msra.mxu0 0.0
    %473 = vmatprep.subr.mxu0 0.0
    %474 = vmatpush1.msra.mxu0 0.0
    %475 = vmatprep.subr.mxu0 0.0
    %476 = vmatpush1.msra.mxu0 0.0
    %477 = vmatprep.subr.mxu0 0.0
    %478 = vmatpush1.msra.mxu0 0.0
    %479 = vmatprep.subr.mxu0 0.0
    %480 = vmatpush1.msra.mxu0 0.0
    %481 = vmatprep.subr.mxu0 0.0
    %482 = vmatpush1.msra.mxu0 0.0
    %483 = vmatprep.subr.mxu0 0.0
    %484 = vmatpush1.msra.mxu0 0.0
    %485 = vmatprep.subr.mxu0 0.0
    %486 = vmatpush1.msra.mxu0 0.0
    %487 = vmatprep.subr.mxu0 0.0
    %488 = vmatpush1.msra.mxu0 0.0
    %489 = vmatprep.subr.mxu0 0.0
    %490 = vmatpush1.msra.mxu0 0.0
    %491 = vmatprep.subr.mxu0 0.0
    %492 = vmatpush1.msra.mxu0 0.0
    %493 = vmatprep.subr.mxu0 0.0
    %494 = vmatpush1.msra.mxu0 0.0
    %495 = vmatprep.subr.mxu0 0.0
    %496 = vmatpush1.msra.mxu0 0.0
    %497 = vmatprep.subr.mxu0 0.0
    %498 = vmatpush1.msra.mxu0 0.0
    %499 = vmatprep.subr.mxu0 0.0
    %500 = vmatpush1.msra.mxu0 0.0
    %501 = vmatprep.subr.mxu0 0.0
    %502 = vmatpush1.msra.mxu0 0.0
    %503 = vmatprep.mubr.f32.mxu0 0.0
    %504 = vmatmul.mubr.f32.gmra.mrb[0].mxu0 %v415
    %v505 = vpop.f32.mrb[0].mxu0
    %v506 = vadd.f32 %v437, %v505
    %v507 = vpop.f32.mrb[0].mxu0
    %508 = vdwg.mxu0
    %v509 = vtanh.pop %v506
    %510 = vst [vmem:[%s8] sm:$0xff] %v245
    %511 = vst [vmem:[#allocation7] sm:$0xff] %v509
    // Predicated region
    $region42: #{_retriever_call.1} parent=1 // pred_check
      _
    $region43: #{_retriever_call.1} parent=1 // pred_check_branch
      %513 = sbr.rel (0) target = $region45
    $region44: #{_retriever_call.1} parent=1 // pred_region
      _
    $region45: #{_retriever_call.1} parent=1 // pred_fallthru
      _
    // Predicated region
    $region46: #{_retriever_call.1} parent=1 // pred_check
      _
    $region47: #{_retriever_call.1} parent=1 // pred_check_branch
      %515 = sbr.rel (0) target = $region49
    $region48: #{_retriever_call.1} parent=1 // pred_region
      %s517 = ssub.s32 128, 128
      %518 = vsyncadd [#allocation4], %s517
      %s520 = sshll.u32 [#allocation7], 4
      %s521 = int_to_ptr.vmem [resolvable:$true] %s520
      %523 = dma.vmem_to_hbm [thread:$0]  %s521, 128, %s9, [#allocation4]
    $region49: #{_retriever_call.1} parent=1 // pred_fallthru
      _
    // Predicated region
    $region50: #{_retriever_call.1} parent=1 // pred_check
      _
    $region51: #{_retriever_call.1} parent=1 // pred_check_branch
      %525 = sbr.rel (0) target = $region53
    $region52: #{_retriever_call.1} parent=1 // pred_region
      _
    $region53: #{_retriever_call.1} parent=1 // pred_fallthru
      _
    // Predicated region
    $region54: #{_retriever_call.1} parent=1 // pred_check
      _
    $region55: #{_retriever_call.1} parent=1 // pred_check_branch
      %527 = sbr.rel (0) target = $region57
    $region56: #{_retriever_call.1} parent=1 // pred_region
      %528 = dma.done [#allocation4], 128
    $region57: #{_retriever_call.1} parent=1 // pred_fallthru
      _
    %529 = vsyncpa [#allocation3], 1
    %530 = vsyncpa [#allocation6], 1
    %531 = vsyncpa [#allocation4], 1

</llo_original>
